<compile_context>
chip_gen: v6e
topology: v6e:2x2x1
jax: 0.10.0
libtpu: 0.0.40
codegen_flags: <defaults>
</compile_context>

<pallas_src>
import functools
import math

import jax
import jax.numpy as jnp
from jax import lax
from jax.experimental import pallas as pl
from jax.experimental.pallas import tpu as pltpu


def _gather_rows_kernel(tok_ref, table_hbm, out_ref, copy_sem, *,
                        block_tokens, scale):
    """Gather `block_tokens` embedding rows from HBM, then scale in place.

    tok_ref:   (N_pad,) int32, SMEM  -- scalar-prefetched token ids
    table_hbm: (V, E)   f32,   HBM   -- memory_space=pl.ANY (no auto-DMA)
    out_ref:   (TB, E)  f32,   VMEM  -- current output block
    copy_sem:  DMA semaphore shared by all row copies of this block
    """
    base = pl.program_id(0) * block_tokens

    # Issue all row DMAs back-to-back so they overlap each other.
    def issue(j, carry):
        row = tok_ref[base + j]
        pltpu.make_async_copy(
            table_hbm.at[pl.ds(row, 1), :],
            out_ref.at[pl.ds(j, 1), :],
            copy_sem,
        ).start()
        return carry

    lax.fori_loop(0, block_tokens, issue, 0)

    # Wait for every copy (descriptors match the issued copies; all copies
    # share one semaphore, so after block_tokens waits all rows are landed).
    def drain(j, carry):
        row = tok_ref[base + j]
        pltpu.make_async_copy(
            table_hbm.at[pl.ds(row, 1), :],
            out_ref.at[pl.ds(j, 1), :],
            copy_sem,
        ).wait()
        return carry

    lax.fori_loop(0, block_tokens, drain, 0)

    # Single sweep for the sqrt(emb_size) scale (done on the gathered rows,
    # no separate gather buffer / extra live range).
    out_ref[...] = out_ref[...] * scale


def token_embedding(tokens, table, *, block_tokens=128):
    """tokens: (...,) int, table: (V, E) f32 -> (..., E) f32.

    Equivalent to nn.Embedding(vocab, E)(tokens) * sqrt(E).
    """
    V, E = table.shape
    orig_shape = tokens.shape

    tok_flat = tokens.reshape(-1).astype(jnp.int32)
    # PyTorch would error on out-of-range ids; we clamp to stay in-bounds.
    tok_flat = jnp.clip(tok_flat, 0, V - 1)
    N = tok_flat.shape[0]

    # Pad token count to a multiple of the block (padding gathers row 0 and
    # is sliced off below).
    n_pad = (-N) % block_tokens
    if n_pad:
        tok_flat = jnp.concatenate(
            [tok_flat, jnp.zeros((n_pad,), jnp.int32)])
    n_total = N + n_pad

    kernel = functools.partial(
        _gather_rows_kernel, block_tokens=block_tokens, scale=math.sqrt(E))

    out = pl.pallas_call(
        kernel,
        out_shape=jax.ShapeDtypeStruct((n_total, E), table.dtype),
        grid_spec=pltpu.PrefetchScalarGridSpec(
            num_scalar_prefetch=1,                 # token ids -> SMEM
            grid=(n_total // block_tokens,),
            in_specs=[
                pl.BlockSpec(memory_space=pl.ANY),  # table stays in HBM
            ],
            out_specs=pl.BlockSpec((block_tokens, E), lambda i, tok: (i, 0)),
            scratch_shapes=[pltpu.SemaphoreType.DMA],
        ),
        compiler_params=pltpu.CompilerParams(
            dimension_semantics=("parallel",),      # shard blocks across TCs
        ),
    )(tok_flat, table)

    out = out[:N]
    return out.reshape(*orig_shape, E)


if __name__ == "__main__":
    # Small but non-trivial shapes implied by the module's forward:
    #   tokens: (batch=4, seq=50) int32 in [0, vocab)  -> N=200 (pads to 256,
    #   two grid steps at block_tokens=128, exercising padding + pipelining)
    #   embedding table: (vocab_size=512, emb_size=256) f32
    vocab_size, emb_size = 512, 256
    batch, seq = 4, 50

    key = jax.random.PRNGKey(0)
    k_tab, k_tok = jax.random.split(key)
    # nn.Embedding default init is N(0, 1)
    table = jax.random.normal(k_tab, (vocab_size, emb_size), dtype=jnp.float32)
    tokens = jax.random.randint(k_tok, (batch, seq), 0, vocab_size,
                                dtype=jnp.int32)

    out = token_embedding(tokens, table)
    out = jax.block_until_ready(out)

    # Pure-JAX reference: embedding(tokens) * sqrt(emb_size)
    ref = jnp.take(table, tokens, axis=0) * math.sqrt(emb_size)
    assert out.shape == (batch, seq, emb_size)
    assert out.dtype == jnp.float32
    assert jnp.allclose(out, ref, atol=1e-5, rtol=1e-5)

    print("KERNEL_OK")
</pallas_src>

<mosaic_0001>
module attributes {stable_mosaic.version = 11 : i64} {
  func.func @_gather_rows_kernel(%arg0: i32, %arg1: memref<256xi32, #tpu.memory_space<smem>>, %arg2: memref<512x256xf32, #tpu.memory_space<any>>, %arg3: memref<128x256xf32, #tpu.memory_space<vmem>>, %arg4: memref<!tpu.dma_semaphore, #tpu.memory_space<semaphore_mem>>) attributes {dimension_semantics = [#tpu.dimension_semantics<parallel>], iteration_bounds = array<i64: 2>, scalar_prefetch = 1 : i64, scratch_operands = 1 : i64, tpu.core_type = #tpu.core_type<tc>, window_params = [{}, {transform_indices = @transform_1, window_bounds = array<i64: 128, 256>}]} {
    %c128_i32 = arith.constant 128 : i32
    %0 = arith.muli %arg0, %c128_i32 : i32
    %c0_i32 = arith.constant 0 : i32
    %c128_i32_0 = arith.constant 128 : i32
    %1 = arith.addi %c0_i32, %c128_i32_0 : i32
    %c1_i32 = arith.constant 1 : i32
    scf.for %arg5 = %c0_i32 to %1 step %c1_i32  : i32 {
      %7 = arith.addi %0, %arg5 : i32
      %8 = arith.index_cast %7 : i32 to index
      %9 = memref.load %arg1[%8] : memref<256xi32, #tpu.memory_space<smem>>
      %c0_i32_9 = arith.constant 0 : i32
      %10 = tpu.memref_slice %arg2[%9, %c0_i32_9] : memref<512x256xf32, #tpu.memory_space<any>> -> memref<1x256xf32, #tpu.memory_space<any>>
      %c0_i32_10 = arith.constant 0 : i32
      %11 = tpu.memref_slice %arg3[%arg5, %c0_i32_10] : memref<128x256xf32, #tpu.memory_space<vmem>> -> memref<1x256xf32, #tpu.memory_space<vmem>>
      tpu.enqueue_dma source(%10 : memref<1x256xf32, #tpu.memory_space<any>>) target(%11 : memref<1x256xf32, #tpu.memory_space<vmem>>) target_semaphore(%arg4 : memref<!tpu.dma_semaphore, #tpu.memory_space<semaphore_mem>>)
    }
    %c128_i32_1 = arith.constant 128 : i32
    %c0_i32_2 = arith.constant 0 : i32
    %c128_i32_3 = arith.constant 128 : i32
    %2 = arith.addi %c0_i32_2, %c128_i32_3 : i32
    %c1_i32_4 = arith.constant 1 : i32
    scf.for %arg5 = %c0_i32_2 to %2 step %c1_i32_4  : i32 {
      %7 = arith.addi %0, %arg5 : i32
      %8 = arith.index_cast %7 : i32 to index
      %9 = memref.load %arg1[%8] : memref<256xi32, #tpu.memory_space<smem>>
      %c0_i32_9 = arith.constant 0 : i32
      %10 = tpu.memref_slice %arg2[%9, %c0_i32_9] : memref<512x256xf32, #tpu.memory_space<any>> -> memref<1x256xf32, #tpu.memory_space<any>>
      %c0_i32_10 = arith.constant 0 : i32
      %11 = tpu.memref_slice %arg3[%arg5, %c0_i32_10] : memref<128x256xf32, #tpu.memory_space<vmem>> -> memref<1x256xf32, #tpu.memory_space<vmem>>
      tpu.wait_dma2 semaphore(%arg4 : memref<!tpu.dma_semaphore, #tpu.memory_space<semaphore_mem>>) src(%10 : memref<1x256xf32, #tpu.memory_space<any>>) dst(%11 : memref<1x256xf32, #tpu.memory_space<vmem>>)
    }
    %c128_i32_5 = arith.constant 128 : i32
    %c0 = arith.constant 0 : index
    %c0_6 = arith.constant 0 : index
    %3 = vector.load %arg3[%c0, %c0_6] : memref<128x256xf32, #tpu.memory_space<vmem>>, vector<128x256xf32>
    %cst = arith.constant 1.600000e+01 : f32
    %4 = vector.broadcast %cst : f32 to vector<128x256xf32>
    %5 = arith.mulf %3, %4 : vector<128x256xf32>
    %c0_7 = arith.constant 0 : index
    %c0_8 = arith.constant 0 : index
    %6 = vector.load %arg3[%c0_7, %c0_8] : memref<128x256xf32, #tpu.memory_space<vmem>>, vector<128x256xf32>
    tpu.vector_store %arg3[%c0_7, %c0_8], %5 {strides = array<i32>} : memref<128x256xf32, #tpu.memory_space<vmem>>, vector<128x256xf32>,
    return
  }
  func.func @transform_1(%arg0: i32, %arg1: memref<256xi32, #tpu.memory_space<smem>>) -> (i32, i32) {
    %c0_i32 = arith.constant 0 : i32
    %c0_i32_0 = arith.constant 0 : i32
    return %arg0, %c0_i32 : i32, i32
  }
}

</mosaic_0001>

<llo_original>
// kernel: tpu_custom_call.1
$region0: #{tpu_custom_call.1}
  #allocation0 [shape = 'u32[]', space=smem, size = 0x4, offset = 0x4, fixed_abs, tag = 'smem constant byte address 0x4 - core index']
  #allocation1 [shape = 'u32[144,128]{1,0:T(1,128)}', space=vmem, size = 0x12000, scoped, tag = 'internal scratch']
  #allocation2 [shape = 's32[1]{0}', space=sflag, size = 0x4, scoped, tag = 'scratch operand']
  #allocation3 [shape = 's32[1]{0}', space=sflag, size = 0x4, scoped, tag = 'scoped memory for tpu_custom_call.1']
  #allocation4 [shape = 'u8[1024]{0}', space=smem, size = 0x400, scoped, tag = 'prefetched SMEM operand 0']
  #allocation7 [shape = 's32[]', space=sflag, size = 0x4, offset = 0, fixed_abs, tag = 'sflag constant byte address 0x0 - dummy sync flag']
  %s0 = inlined_call_operand.hbm [shape: s32[256], index: 0, kind: input, shape index: {}]
  %s1 = inlined_call_operand.hbm [shape: f32[512,256], index: 1, kind: input, shape index: {}]
  %s2 = inlined_call_operand.hbm [shape: f32[256,256], index: 2, kind: output, shape index: {}]
  %s3 = sld [smem:[#allocation0]]
  $region39: #{tpu_custom_call.1} parent=0
    _
  %s5 = ssub.s32 1, %s3
  %s6 = scalar_select 0, %s5, %s3
  %8 = dma.hbm_to_smem %s0, 32, [#allocation4], [#allocation3]
  %9 = dma.done [#allocation3], 32
  %10 = sfence
  $region1: #{tpu_custom_call.1} parent=0
    #allocation5 [shape = 'u8[262144]{0}', space=vmem, size = 0x40000, scoped, tag = 'output window, operand 0']
    #allocation6 [shape = 's32[2]{0}', space=sflag, size = 0x8, scoped, tag = 'scoped memory for tpu_custom_call.1']
    %11 = vsyncpa [#allocation6], 0
    %s12 = scalar_lea.sflag [#allocation6], 1
    %13 = vsyncpa %s12, 0
    loop: start=0, step=1, limit=3
    $region2: #{tpu_custom_call.1} parent=1 // loop_pre_header
      _
    $region3: #{tpu_custom_call.1} parent=1 // loop_header
      %s15 = sphi 0, %s19
      %p16 = scmp.ge.s32.totalorder %s15, 3
      %s24 = sphi 0, %s26
      %s27 = sphi 0, %s24
      %s37 = sphi 0, %s27
    $region4: #{tpu_custom_call.1} parent=1 // loop_header_branch
      %18 = sbr.rel (%p16) target = $region8
    $region5: #{tpu_custom_call.1} parent=1 // loop_body
      %s20 = ssub.s32 %s15, 1
      %s21 = sadd.s32 %s15, 1
      %s22 = ssub.s32 %s15, %s21
      %p23 = scmp.eq.s32.totalorder %s22, 0
      %s25 = sadd.s32 %s24, 1
      %s26 = scalar_select %p23, %s24, %s25
      %p28 = pneg %p23
      %p29 = scmp.eq.s32.totalorder %s15, 1
      %p30 = por %p28, %p29
      %p31 = scmp.ne.s32.totalorder %s24, %s27
      %p32 = scmp.eq.s32.totalorder %s15, 0
      %p33 = por %p31, %p32
      %p34 = scmp.ne.s32.totalorder %s24, %s27
      %p35 = scmp.eq.s32.totalorder %s20, 1
      %p36 = por %p34, %p35
      %p38 = scmp.ne.s32.totalorder %s27, %s37
      %p39 = scmp.eq.s32.totalorder %s20, 0
      %p40 = por %p38, %p39
      %p41 = scmp.lt.s32.totalorder %s15, 2
      // Predicated region
      $region9: #{tpu_custom_call.1} parent=5 // pred_check
        %p42 = pneg %p41
      $region10: #{tpu_custom_call.1} parent=5 // pred_check_branch
        %44 = sbr.rel (%p42) target = $region12
      $region11: #{tpu_custom_call.1} parent=5 // pred_region
        %p45 = pneg %p33
        %p46 = pneg %p30
        %s47 = sand.u32 %s24, 1
        %s48 = scalar_lea.sflag [#allocation6], %s47
        %s49 = sand.u32 %s24, 1
        %s50 = smul.addr %s49, 256
        %s51 = scalar_lea.vmem [#allocation5], %s50
        %s52 = smul.u32 16, %s15
        %s53 = smul.u32 %s15, 128
        loop: start=0, step=1, limit=128
        $region13: #{tpu_custom_call.1} parent=11 // loop_pre_header
          _
        $region14: #{tpu_custom_call.1} parent=11 // loop_header
          %s55 = sphi 0, %s59
          %p56 = scmp.ge.s32.totalorder %s55, 128
        $region15: #{tpu_custom_call.1} parent=11 // loop_header_branch
          %58 = sbr.rel (%p56) target = $region19
        $region16: #{tpu_custom_call.1} parent=11 // loop_body
          %s60 = sadd.s32 %s53, %s55
          %s61 = sld [smem:[#allocation4 + %s60]]
          %s62 = sshrl.u32 %s61, 3
          %s63 = sand.u32 %s61, 7
          %s64 = smul.u32 %s62, 16
          %s65 = sadd.s32 %s63, %s64
          %s66 = smul.addr %s65, 16
          %s67 = scalar_lea.hbm %s1, %s66
          %s68 = sshrl.u32 %s55, 3
          %s69 = sand.u32 %s55, 7
          %s70 = smul.u32 %s68, 16
          %s71 = sadd.s32 %s69, %s70
          %s72 = scalar_lea.vmem %s51, %s71 [#allocation5]
          %s74 = sshll.u32 %s72, 4
          %s75 = int_to_ptr.vmem [resolvable:$true] %s74
          %77 = dma.hbm_to_vmem [thread:$0]  %s67, 32, %s75, [#allocation2], 128, 128, 1
        $region17: #{tpu_custom_call.1} parent=11 // loop_footer
          %s59 = sadd.s32 1, %s55
        $region18: #{tpu_custom_call.1} parent=11 // loop_footer_branch
          %54 = sbr.rel target = $region14
        $region19: #{tpu_custom_call.1} parent=11 // loop_exit
          _
        loop: start=0, step=1, limit=128
        $region20: #{tpu_custom_call.1} parent=11 // loop_pre_header
          _
        $region21: #{tpu_custom_call.1} parent=11 // loop_header
          %s79 = sphi 0, %s83
          %p80 = scmp.ge.s32.totalorder %s79, 128
        $region22: #{tpu_custom_call.1} parent=11 // loop_header_branch
          %82 = sbr.rel (%p80) target = $region26
        $region23: #{tpu_custom_call.1} parent=11 // loop_body
          %s84 = sadd.s32 %s53, %s79
          %s85 = sld [smem:[#allocation4 + %s84]]
          %s86 = smul.u32 1, 2
          %s87 = sshll.u32 %s86, 4
          %88 = dma.done [#allocation2], %s87
        $region24: #{tpu_custom_call.1} parent=11 // loop_footer
          %s83 = sadd.s32 1, %s79
        $region25: #{tpu_custom_call.1} parent=11 // loop_footer_branch
          %78 = sbr.rel target = $region21
        $region26: #{tpu_custom_call.1} parent=11 // loop_exit
          _
        %v89 = vld [vmem:[%s51] sm:$0xff]
        %v90 = vld [vmem:[%s51 + $0x8] sm:$0xff]
        %v91 = vld [vmem:[%s51 + $0x10] sm:$0xff]
        %v92 = vld [vmem:[%s51 + $0x18] sm:$0xff]
        %v93 = vld [vmem:[%s51 + $0x20] sm:$0xff]
        %v94 = vld [vmem:[%s51 + $0x28] sm:$0xff]
        %v95 = vld [vmem:[%s51 + $0x30] sm:$0xff]
        %v96 = vld [vmem:[%s51 + $0x38] sm:$0xff]
        %v97 = vld [vmem:[%s51 + $0x40] sm:$0xff]
        %v98 = vld [vmem:[%s51 + $0x48] sm:$0xff]
        %v99 = vld [vmem:[%s51 + $0x50] sm:$0xff]
        %v100 = vld [vmem:[%s51 + $0x58] sm:$0xff]
        %v101 = vld [vmem:[%s51 + $0x60] sm:$0xff]
        %v102 = vld [vmem:[%s51 + $0x68] sm:$0xff]
        %v103 = vld [vmem:[%s51 + $0x70] sm:$0xff]
        %v104 = vld [vmem:[%s51 + $0x78] sm:$0xff]
        %v105 = vld [vmem:[%s51 + $0x80] sm:$0xff]
        %v106 = vld [vmem:[%s51 + $0x88] sm:$0xff]
        %v107 = vld [vmem:[%s51 + $0x90] sm:$0xff]
        %v108 = vld [vmem:[%s51 + $0x98] sm:$0xff]
        %v109 = vld [vmem:[%s51 + $0xa0] sm:$0xff]
        %v110 = vld [vmem:[%s51 + $0xa8] sm:$0xff]
        %v111 = vld [vmem:[%s51 + $0xb0] sm:$0xff]
        %v112 = vld [vmem:[%s51 + $0xb8] sm:$0xff]
        %v113 = vld [vmem:[%s51 + $0xc0] sm:$0xff]
        %v114 = vld [vmem:[%s51 + $0xc8] sm:$0xff]
        %v115 = vld [vmem:[%s51 + $0xd0] sm:$0xff]
        %v116 = vld [vmem:[%s51 + $0xd8] sm:$0xff]
        %v117 = vld [vmem:[%s51 + $0xe0] sm:$0xff]
        %v118 = vld [vmem:[%s51 + $0xe8] sm:$0xff]
        %v119 = vld [vmem:[%s51 + $0xf0] sm:$0xff]
        %v120 = vld [vmem:[%s51 + $0xf8] sm:$0xff]
        %v121 = vmul.f32 %v89, 16.0
        %v122 = vmul.f32 %v90, 16.0
        %v123 = vmul.f32 %v91, 16.0
        %v124 = vmul.f32 %v92, 16.0
        %v125 = vmul.f32 %v93, 16.0
        %v126 = vmul.f32 %v94, 16.0
        %v127 = vmul.f32 %v95, 16.0
        %v128 = vmul.f32 %v96, 16.0
        %v129 = vmul.f32 %v97, 16.0
        %v130 = vmul.f32 %v98, 16.0
        %v131 = vmul.f32 %v99, 16.0
        %v132 = vmul.f32 %v100, 16.0
        %v133 = vmul.f32 %v101, 16.0
        %v134 = vmul.f32 %v102, 16.0
        %v135 = vmul.f32 %v103, 16.0
        %v136 = vmul.f32 %v104, 16.0
        %v137 = vmul.f32 %v105, 16.0
        %v138 = vmul.f32 %v106, 16.0
        %v139 = vmul.f32 %v107, 16.0
        %v140 = vmul.f32 %v108, 16.0
        %v141 = vmul.f32 %v109, 16.0
        %v142 = vmul.f32 %v110, 16.0
        %v143 = vmul.f32 %v111, 16.0
        %v144 = vmul.f32 %v112, 16.0
        %v145 = vmul.f32 %v113, 16.0
        %v146 = vmul.f32 %v114, 16.0
        %v147 = vmul.f32 %v115, 16.0
        %v148 = vmul.f32 %v116, 16.0
        %v149 = vmul.f32 %v117, 16.0
        %v150 = vmul.f32 %v118, 16.0
        %v151 = vmul.f32 %v119, 16.0
        %v152 = vmul.f32 %v120, 16.0
        %153 = vst [vmem:[%s51] sm:$0xff] %v121
        %154 = vst [vmem:[%s51 + $0x8] sm:$0xff] %v122
        %155 = vst [vmem:[%s51 + $0x10] sm:$0xff] %v123
        %156 = vst [vmem:[%s51 + $0x18] sm:$0xff] %v124
        %157 = vst [vmem:[%s51 + $0x20] sm:$0xff] %v125
        %158 = vst [vmem:[%s51 + $0x28] sm:$0xff] %v126
        %159 = vst [vmem:[%s51 + $0x30] sm:$0xff] %v127
        %160 = vst [vmem:[%s51 + $0x38] sm:$0xff] %v128
        %161 = vst [vmem:[%s51 + $0x40] sm:$0xff] %v129
        %162 = vst [vmem:[%s51 + $0x48] sm:$0xff] %v130
        %163 = vst [vmem:[%s51 + $0x50] sm:$0xff] %v131
        %164 = vst [vmem:[%s51 + $0x58] sm:$0xff] %v132
        %165 = vst [vmem:[%s51 + $0x60] sm:$0xff] %v133
        %166 = vst [vmem:[%s51 + $0x68] sm:$0xff] %v134
        %167 = vst [vmem:[%s51 + $0x70] sm:$0xff] %v135
        %168 = vst [vmem:[%s51 + $0x78] sm:$0xff] %v136
        %169 = vst [vmem:[%s51 + $0x80] sm:$0xff] %v137
        %170 = vst [vmem:[%s51 + $0x88] sm:$0xff] %v138
        %171 = vst [vmem:[%s51 + $0x90] sm:$0xff] %v139
        %172 = vst [vmem:[%s51 + $0x98] sm:$0xff] %v140
        %173 = vst [vmem:[%s51 + $0xa0] sm:$0xff] %v141
        %174 = vst [vmem:[%s51 + $0xa8] sm:$0xff] %v142
        %175 = vst [vmem:[%s51 + $0xb0] sm:$0xff] %v143
        %176 = vst [vmem:[%s51 + $0xb8] sm:$0xff] %v144
        %177 = vst [vmem:[%s51 + $0xc0] sm:$0xff] %v145
        %178 = vst [vmem:[%s51 + $0xc8] sm:$0xff] %v146
        %179 = vst [vmem:[%s51 + $0xd0] sm:$0xff] %v147
        %180 = vst [vmem:[%s51 + $0xd8] sm:$0xff] %v148
        %181 = vst [vmem:[%s51 + $0xe0] sm:$0xff] %v149
        %182 = vst [vmem:[%s51 + $0xe8] sm:$0xff] %v150
        %183 = vst [vmem:[%s51 + $0xf0] sm:$0xff] %v151
        %184 = vst [vmem:[%s51 + $0xf8] sm:$0xff] %v152
        %s185 = sand.u32 %s24, 1
        %s186 = scalar_lea.sflag [#allocation6], %s185
        %s187 = sand.u32 %s24, 1
        %s188 = smul.addr %s187, 256
        %s189 = scalar_lea.vmem [#allocation5], %s188
        // Predicated region
        $region27: #{tpu_custom_call.1} parent=11 // pred_check
          %p190 = pneg %p30
        $region28: #{tpu_custom_call.1} parent=11 // pred_check_branch
          %192 = sbr.rel (%p190) target = $region30
        $region29: #{tpu_custom_call.1} parent=11 // pred_region
          %s193 = smul.u32 16, %s15
          %s195 = ssub.s32 4096, 4096
          %196 = vsyncadd %s186, %s195
          %s197 = smul.addr %s193, 2
          %s198 = smul.addr %s197, 128
          %s199 = scalar_lea.hbm %s2, %s198
          %s200 = sshll.u32 %s189, 4
          %s201 = int_to_ptr.vmem [resolvable:$true] %s200
          %206 = dma.vmem_to_hbm [thread:$0]  %s201, 4096, %s199, %s186, 256, 256, 16
        $region30: #{tpu_custom_call.1} parent=11 // pred_fallthru
          _
      $region12: #{tpu_custom_call.1} parent=5 // pred_fallthru
        _
      %p207 = scmp.le.s32.totalorder 1, %s15
      // Predicated region
      $region31: #{tpu_custom_call.1} parent=5 // pred_check
        %p208 = pneg %p207
      $region32: #{tpu_custom_call.1} parent=5 // pred_check_branch
        %210 = sbr.rel (%p208) target = $region34
      $region33: #{tpu_custom_call.1} parent=5 // pred_region
        %s211 = ssub.s32 %s15, 1
        // Predicated region
        $region35: #{tpu_custom_call.1} parent=33 // pred_check
          %p212 = pneg %p36
        $region36: #{tpu_custom_call.1} parent=33 // pred_check_branch
          %214 = sbr.rel (%p212) target = $region38
        $region37: #{tpu_custom_call.1} parent=33 // pred_region
          %s215 = sand.u32 %s27, 1
          %s216 = scalar_lea.sflag [#allocation6], %s215
          %s217 = sand.u32 %s27, 1
          %s218 = smul.addr %s217, 256
          %s219 = scalar_lea.vmem [#allocation5], %s218
          %220 = dma.done %s216, 4096
        $region38: #{tpu_custom_call.1} parent=33 // pred_fallthru
          _
      $region34: #{tpu_custom_call.1} parent=5 // pred_fallthru
        _
    $region6: #{tpu_custom_call.1} parent=1 // loop_footer
      %s19 = sadd.s32 1, %s15
    $region7: #{tpu_custom_call.1} parent=1 // loop_footer_branch
      %14 = sbr.rel target = $region3
    $region8: #{tpu_custom_call.1} parent=1 // loop_exit
      _
    %221 = vsyncpa [#allocation6], 1
    %s222 = scalar_lea.sflag [#allocation6], 1
    %223 = vsyncpa %s222, 1
  %224 = vsyncmov [#allocation2]
  %s225 = vpop.sfrf %224
  %p226 = scmp.eq.s32.totalorder %s225, 0
  %p227 = pneg %p226
  %229 = shalt.err (%p227)

</llo_original>
